<compile_context>
chip_gen: v6e
topology: v6e:2x2x1
jax: 0.10.0
libtpu: 0.0.40
codegen_flags: <defaults>
</compile_context>

<pallas_src>
import jax
import jax.numpy as jnp
from jax import lax
from jax.experimental import pallas as pl
from jax.experimental.pallas import tpu as pltpu


def _cnet_kernel(s_ref, a_ref, ws_ref, wa_ref, b1_ref, wo_ref, bo_ref, out_ref):
    # s_ref : (tm, s_dim)  batch-major state tile
    # a_ref : (tm, a_dim)  batch-major action tile
    # ws_ref: (H, s_dim)   fcs.weight          (VMEM-resident)
    # wa_ref: (H, a_dim)   fca.weight          (VMEM-resident)
    # b1_ref: (H, 1)       fcs.bias + fca.bias (column)
    # wo_ref: (H, 1)       out.weight^T        (column)
    # bo_ref: (1, 1)       out.bias
    # out_ref: (1, tm)     q^T for this batch tile (lane-dense)
    dn = (((1,), (1,)), ((), ()))  # contract the feature dim of both operands
    hs = lax.dot_general(ws_ref[...], s_ref[...], dn,
                         preferred_element_type=jnp.float32)       # (H, tm)
    ha = lax.dot_general(wa_ref[...], a_ref[...], dn,
                         preferred_element_type=jnp.float32)       # (H, tm)
    h = jnp.maximum(hs + ha + b1_ref[...], jnp.float32(0.0))       # (H, tm)
    # 30 -> 1 output layer as broadcast-multiply + sublane reduce (lane-dense).
    out_ref[...] = jnp.sum(h * wo_ref[...], axis=0, keepdims=True) + bo_ref[...]


def _round_up(x, m):
    return ((x + m - 1) // m) * m


def cnet_forward(s, a, params, *, tm_max=8192):
    """Pallas-backed CNet forward.  s: (B, s_dim), a: (B, a_dim) -> (B, 1)."""
    ws, wa, b1, wo, bo = params
    B, s_dim = s.shape
    _, a_dim = a.shape
    H = ws.shape[0]
    assert ws.shape == (H, s_dim) and wa.shape == (H, a_dim)

    s = s.astype(jnp.float32)   # no-op for f32 inputs
    a = a.astype(jnp.float32)

    # Batch tile: aim for >= 2 grid steps (v7x two-TC split), multiple of 128
    # lanes so output blocks stay lane-aligned; single exact block for tiny B.
    tm = min(tm_max, _round_up(pl.cdiv(B, 2), 128))
    if tm >= B:
        tm = B
    grid = (pl.cdiv(B, tm),)

    const = lambda i: (0, 0)  # weights/biases: fetched once, VMEM-resident

    out = pl.pallas_call(
        _cnet_kernel,
        out_shape=jax.ShapeDtypeStruct((1, B), jnp.float32),
        grid=grid,
        in_specs=[
            pl.BlockSpec((tm, s_dim), lambda i: (i, 0)),   # s: tiled over batch
            pl.BlockSpec((tm, a_dim), lambda i: (i, 0)),   # a: tiled over batch
            pl.BlockSpec(ws.shape, const),
            pl.BlockSpec(wa.shape, const),
            pl.BlockSpec(b1.shape, const),
            pl.BlockSpec(wo.shape, const),
            pl.BlockSpec(bo.shape, const),
        ],
        out_specs=pl.BlockSpec((1, tm), lambda i: (0, i)),
        compiler_params=pltpu.CompilerParams(
            dimension_semantics=("parallel",),
            vmem_limit_bytes=32 * 1024 * 1024,
        ),
    )(s, a, ws, wa, b1, wo, bo)

    return out.reshape(B, 1)


def init_cnet_params(key, s_dim, a_dim, hidden=30):
    """Deterministic params mirroring CNet.__init__, pre-packed for the kernel.

    fcs/fca/out weights ~ N(0, 0.1) (the .normal_(0, 0.1) calls); biases use
    PyTorch's default Linear init U(-1/sqrt(fan_in), 1/sqrt(fan_in)).
    Packed layout:
      ws: (hidden, s_dim) = fcs.weight
      wa: (hidden, a_dim) = fca.weight
      b1: (hidden, 1)     = fcs.bias + fca.bias
      wo: (hidden, 1)     = out.weight^T
      bo: (1, 1)          = out.bias
    """
    k = jax.random.split(key, 6)
    ws = 0.1 * jax.random.normal(k[0], (hidden, s_dim), dtype=jnp.float32)
    wa = 0.1 * jax.random.normal(k[1], (hidden, a_dim), dtype=jnp.float32)
    out_w = 0.1 * jax.random.normal(k[2], (1, hidden), dtype=jnp.float32)
    fcs_b = jax.random.uniform(k[3], (hidden,), dtype=jnp.float32,
                               minval=-1.0 / float(s_dim) ** 0.5,
                               maxval=1.0 / float(s_dim) ** 0.5)
    fca_b = jax.random.uniform(k[4], (hidden,), dtype=jnp.float32,
                               minval=-1.0 / float(a_dim) ** 0.5,
                               maxval=1.0 / float(a_dim) ** 0.5)
    out_b = jax.random.uniform(k[5], (1,), dtype=jnp.float32,
                               minval=-1.0 / float(hidden) ** 0.5,
                               maxval=1.0 / float(hidden) ** 0.5)
    b1 = (fcs_b + fca_b).reshape(hidden, 1)
    wo = out_w.T
    bo = out_b.reshape(1, 1)
    return ws, wa, b1, wo, bo


def cnet_reference(s, a, params):
    ws, wa, b1, wo, bo = params
    net = jnp.maximum(s @ ws.T + a @ wa.T + b1[:, 0], 0.0)
    return net @ wo + bo


if __name__ == "__main__":
    key = jax.random.PRNGKey(0)
    batch, s_dim, a_dim = 8, 16, 4

    k_s, k_a, k_p = jax.random.split(key, 3)
    s = jax.random.normal(k_s, (batch, s_dim), dtype=jnp.float32)
    a = jax.random.normal(k_a, (batch, a_dim), dtype=jnp.float32)
    params = init_cnet_params(k_p, s_dim, a_dim)

    # Tiny batch: single exact full-array block.
    q = jax.block_until_ready(cnet_forward(s, a, params))
    q_ref = cnet_reference(s, a, params)
    assert q.shape == (batch, 1)
    assert jnp.allclose(q, q_ref, atol=1e-4, rtol=1e-4)

    # Multi-step grid with a ragged (non-dividing) tail block, small tm.
    batch2 = 300
    k_s2, k_a2 = jax.random.split(k_s)
    s2 = jax.random.normal(k_s2, (batch2, s_dim), dtype=jnp.float32)
    a2 = jax.random.normal(k_a2, (batch2, a_dim), dtype=jnp.float32)
    q2 = jax.block_until_ready(cnet_forward(s2, a2, params, tm_max=128))
    q2_ref = cnet_reference(s2, a2, params)
    assert q2.shape == (batch2, 1)
    assert jnp.allclose(q2, q2_ref, atol=1e-4, rtol=1e-4)

    # Default tiling path: >= 2 grid steps (v7x two-TC split) + ragged tail.
    batch3 = 1000
    k_s3, k_a3 = jax.random.split(k_a)
    s3 = jax.random.normal(k_s3, (batch3, s_dim), dtype=jnp.float32)
    a3 = jax.random.normal(k_a3, (batch3, a_dim), dtype=jnp.float32)
    q3 = jax.block_until_ready(cnet_forward(s3, a3, params))
    q3_ref = cnet_reference(s3, a3, params)
    assert q3.shape == (batch3, 1)
    assert jnp.allclose(q3, q3_ref, atol=1e-4, rtol=1e-4)

    print("KERNEL_OK")
</pallas_src>

<mosaic_0001>
module attributes {stable_mosaic.version = 11 : i64} {
  func.func @_cnet_kernel(%arg0: i32, %arg1: memref<8x16xf32, #tpu.memory_space<vmem>>, %arg2: memref<8x4xf32, #tpu.memory_space<vmem>>, %arg3: memref<30x16xf32, #tpu.memory_space<vmem>>, %arg4: memref<30x4xf32, #tpu.memory_space<vmem>>, %arg5: memref<30x1xf32, #tpu.memory_space<vmem>>, %arg6: memref<30x1xf32, #tpu.memory_space<vmem>>, %arg7: memref<1x1xf32, #tpu.memory_space<vmem>>, %arg8: memref<1x8xf32, #tpu.memory_space<vmem>>) attributes {dimension_semantics = [#tpu.dimension_semantics<parallel>], iteration_bounds = array<i64: 1>, scalar_prefetch = 0 : i64, scratch_operands = 0 : i64, tpu.core_type = #tpu.core_type<tc>, window_params = [{transform_indices = @transform_0, window_bounds = array<i64: 8, 16>}, {transform_indices = @transform_1, window_bounds = array<i64: 8, 4>}, {pipeline_mode = #tpu.pipeline_mode<synchronous>, transform_indices = @transform_2, window_bounds = array<i64: 30, 16>}, {pipeline_mode = #tpu.pipeline_mode<synchronous>, transform_indices = @transform_3, window_bounds = array<i64: 30, 4>}, {pipeline_mode = #tpu.pipeline_mode<synchronous>, transform_indices = @transform_4, window_bounds = array<i64: 30, 1>}, {pipeline_mode = #tpu.pipeline_mode<synchronous>, transform_indices = @transform_5, window_bounds = array<i64: 30, 1>}, {pipeline_mode = #tpu.pipeline_mode<synchronous>, transform_indices = @transform_6, window_bounds = array<i64: 1, 1>}, {transform_indices = @transform_7, window_bounds = array<i64: 1, 8>}]} {
    %c0 = arith.constant 0 : index
    %c0_0 = arith.constant 0 : index
    %0 = vector.load %arg3[%c0, %c0_0] : memref<30x16xf32, #tpu.memory_space<vmem>>, vector<30x16xf32>
    %c0_1 = arith.constant 0 : index
    %c0_2 = arith.constant 0 : index
    %1 = vector.load %arg1[%c0_1, %c0_2] : memref<8x16xf32, #tpu.memory_space<vmem>>, vector<8x16xf32>
    %cst = arith.constant dense<0.000000e+00> : vector<30x8xf32>
    %2 = tpu.matmul %0, %1, %cst {dimension_numbers = #tpu.dot_dimension_numbers<[1], [1], [0], [0], [0, 0, 1, 0], [], []>} : vector<30x16xf32>, vector<8x16xf32>, vector<30x8xf32> -> vector<30x8xf32>
    %c0_3 = arith.constant 0 : index
    %c0_4 = arith.constant 0 : index
    %3 = vector.load %arg4[%c0_3, %c0_4] : memref<30x4xf32, #tpu.memory_space<vmem>>, vector<30x4xf32>
    %c0_5 = arith.constant 0 : index
    %c0_6 = arith.constant 0 : index
    %4 = vector.load %arg2[%c0_5, %c0_6] : memref<8x4xf32, #tpu.memory_space<vmem>>, vector<8x4xf32>
    %cst_7 = arith.constant dense<0.000000e+00> : vector<30x8xf32>
    %5 = tpu.matmul %3, %4, %cst_7 {dimension_numbers = #tpu.dot_dimension_numbers<[1], [1], [0], [0], [0, 0, 1, 0], [], []>} : vector<30x4xf32>, vector<8x4xf32>, vector<30x8xf32> -> vector<30x8xf32>
    %6 = arith.addf %2, %5 : vector<30x8xf32>
    %c0_8 = arith.constant 0 : index
    %c0_9 = arith.constant 0 : index
    %7 = vector.load %arg5[%c0_8, %c0_9] : memref<30x1xf32, #tpu.memory_space<vmem>>, vector<30x1xf32>
    %8 = vector.broadcast %7 : vector<30x1xf32> to vector<30x8xf32>
    %9 = arith.addf %6, %8 : vector<30x8xf32>
    %cst_10 = arith.constant 0.000000e+00 : f32
    %10 = vector.broadcast %cst_10 : f32 to vector<30x8xf32>
    %11 = arith.maximumf %9, %10 : vector<30x8xf32>
    %c0_11 = arith.constant 0 : index
    %c0_12 = arith.constant 0 : index
    %12 = vector.load %arg6[%c0_11, %c0_12] : memref<30x1xf32, #tpu.memory_space<vmem>>, vector<30x1xf32>
    %13 = vector.broadcast %12 : vector<30x1xf32> to vector<30x8xf32>
    %14 = arith.mulf %11, %13 : vector<30x8xf32>
    %cst_13 = arith.constant dense<0.000000e+00> : vector<8xf32>
    %15 = vector.multi_reduction <add>, %14, %cst_13 [0] : vector<30x8xf32> to vector<8xf32>
    %16 = vector.shape_cast %15 : vector<8xf32> to vector<1x8xf32>
    %c0_14 = arith.constant 0 : index
    %c0_15 = arith.constant 0 : index
    %17 = vector.load %arg7[%c0_14, %c0_15] : memref<1x1xf32, #tpu.memory_space<vmem>>, vector<1x1xf32>
    %18 = vector.broadcast %17 : vector<1x1xf32> to vector<1x8xf32>
    %19 = arith.addf %16, %18 : vector<1x8xf32>
    %c0_16 = arith.constant 0 : index
    %c0_17 = arith.constant 0 : index
    %20 = vector.load %arg8[%c0_16, %c0_17] : memref<1x8xf32, #tpu.memory_space<vmem>>, vector<1x8xf32>
    tpu.vector_store %arg8[%c0_16, %c0_17], %19 {strides = array<i32>} : memref<1x8xf32, #tpu.memory_space<vmem>>, vector<1x8xf32>,
    return
  }
  func.func @transform_0(%arg0: i32) -> (i32, i32) {
    %c0_i32 = arith.constant 0 : i32
    %c0_i32_0 = arith.constant 0 : i32
    return %arg0, %c0_i32 : i32, i32
  }
  func.func @transform_1(%arg0: i32) -> (i32, i32) {
    %c0_i32 = arith.constant 0 : i32
    %c0_i32_0 = arith.constant 0 : i32
    return %arg0, %c0_i32 : i32, i32
  }
  func.func @transform_2(%arg0: i32) -> (i32, i32) {
    %c0_i32 = arith.constant 0 : i32
    %c0_i32_0 = arith.constant 0 : i32
    %c0_i32_1 = arith.constant 0 : i32
    return %c0_i32, %c0_i32_0 : i32, i32
  }
  func.func @transform_3(%arg0: i32) -> (i32, i32) {
    %c0_i32 = arith.constant 0 : i32
    %c0_i32_0 = arith.constant 0 : i32
    %c0_i32_1 = arith.constant 0 : i32
    return %c0_i32, %c0_i32_0 : i32, i32
  }
  func.func @transform_4(%arg0: i32) -> (i32, i32) {
    %c0_i32 = arith.constant 0 : i32
    %c0_i32_0 = arith.constant 0 : i32
    %c0_i32_1 = arith.constant 0 : i32
    return %c0_i32, %c0_i32_0 : i32, i32
  }
  func.func @transform_5(%arg0: i32) -> (i32, i32) {
    %c0_i32 = arith.constant 0 : i32
    %c0_i32_0 = arith.constant 0 : i32
    %c0_i32_1 = arith.constant 0 : i32
    return %c0_i32, %c0_i32_0 : i32, i32
  }
  func.func @transform_6(%arg0: i32) -> (i32, i32) {
    %c0_i32 = arith.constant 0 : i32
    %c0_i32_0 = arith.constant 0 : i32
    %c0_i32_1 = arith.constant 0 : i32
    return %c0_i32, %c0_i32_0 : i32, i32
  }
  func.func @transform_7(%arg0: i32) -> (i32, i32) {
    %c0_i32 = arith.constant 0 : i32
    %c0_i32_0 = arith.constant 0 : i32
    return %c0_i32, %arg0 : i32, i32
  }
}

</mosaic_0001>

<llo_original>
// kernel: tpu_custom_call.1
$region0: #{tpu_custom_call.1}
  #allocation0 [shape = 'u32[]', space=smem, size = 0x4, offset = 0x4, fixed_abs, tag = 'smem constant byte address 0x4 - core index']
  #allocation1 [shape = 'u32[144,128]{1,0:T(1,128)}', space=vmem, size = 0x12000, scoped, tag = 'internal scratch']
  #allocation2 [shape = 'f32[1,1]{1,0:T(1,128)S(1)}', space=vmem, size = 0x200, scoped, tag = 'scoped memory for tpu_custom_call.1']
  %s0 = inlined_call_operand.vmem [shape: f32[8,16], index: 0, kind: input, shape index: {}]
  %s1 = inlined_call_operand.vmem [shape: f32[8,4], index: 1, kind: input, shape index: {}]
  %s2 = inlined_call_operand.vmem [shape: f32[30,16], index: 2, kind: input, shape index: {}]
  %s3 = inlined_call_operand.vmem [shape: f32[30,4], index: 3, kind: input, shape index: {}]
  %s4 = inlined_call_operand.vmem [shape: f32[30,1], index: 4, kind: input, shape index: {}]
  %s5 = inlined_call_operand.vmem [shape: f32[30,1], index: 5, kind: input, shape index: {}]
  %s6 = inlined_call_operand.<no memory space> [shape: f32[1,1], index: 6, kind: input, shape index: {}]
  %s7 = inlined_call_operand.hbm [shape: f32[1,8], index: 7, kind: output, shape index: {}]
  %s8 = sld [smem:[#allocation0]]
  $region38: #{tpu_custom_call.1} parent=0
    _
  %s10 = ssub.s32 1, %s8
  %s11 = scalar_select 0, %s10, %s8
  %v12 = vstv %s6
  %13 = vst [vmem:[#allocation2] sm:$0x1] %v12
  $region1: #{tpu_custom_call.1} parent=0
    #allocation3 [shape = 'u8[512]{0}', space=vmem, size = 0x400, scoped, tag = 'output window, operand 0, single buffered']
    #allocation4 [shape = 's32[1]{0}', space=sflag, size = 0x4, scoped, tag = 'scoped memory for tpu_custom_call.1']
    %14 = vsyncpa [#allocation4], 0
    // Predicated region
    $region2: #{tpu_custom_call.1} parent=1 // pred_check
      _
    $region3: #{tpu_custom_call.1} parent=1 // pred_check_branch
      %16 = sbr.rel (0) target = $region5
    $region4: #{tpu_custom_call.1} parent=1 // pred_region
      _
    $region5: #{tpu_custom_call.1} parent=1 // pred_fallthru
      _
    // Predicated region
    $region6: #{tpu_custom_call.1} parent=1 // pred_check
      _
    $region7: #{tpu_custom_call.1} parent=1 // pred_check_branch
      %18 = sbr.rel (0) target = $region9
    $region8: #{tpu_custom_call.1} parent=1 // pred_region
      _
    $region9: #{tpu_custom_call.1} parent=1 // pred_fallthru
      _
    // Predicated region
    $region10: #{tpu_custom_call.1} parent=1 // pred_check
      _
    $region11: #{tpu_custom_call.1} parent=1 // pred_check_branch
      %20 = sbr.rel (0) target = $region13
    $region12: #{tpu_custom_call.1} parent=1 // pred_region
      _
    $region13: #{tpu_custom_call.1} parent=1 // pred_fallthru
      _
    // Predicated region
    $region14: #{tpu_custom_call.1} parent=1 // pred_check
      _
    $region15: #{tpu_custom_call.1} parent=1 // pred_check_branch
      %22 = sbr.rel (0) target = $region17
    $region16: #{tpu_custom_call.1} parent=1 // pred_region
      _
    $region17: #{tpu_custom_call.1} parent=1 // pred_fallthru
      _
    // Predicated region
    $region18: #{tpu_custom_call.1} parent=1 // pred_check
      _
    $region19: #{tpu_custom_call.1} parent=1 // pred_check_branch
      %24 = sbr.rel (0) target = $region21
    $region20: #{tpu_custom_call.1} parent=1 // pred_region
      _
    $region21: #{tpu_custom_call.1} parent=1 // pred_fallthru
      _
    // Predicated region
    $region22: #{tpu_custom_call.1} parent=1 // pred_check
      _
    $region23: #{tpu_custom_call.1} parent=1 // pred_check_branch
      %26 = sbr.rel (0) target = $region25
    $region24: #{tpu_custom_call.1} parent=1 // pred_region
      _
    $region25: #{tpu_custom_call.1} parent=1 // pred_fallthru
      _
    // Predicated region
    $region26: #{tpu_custom_call.1} parent=1 // pred_check
      _
    $region27: #{tpu_custom_call.1} parent=1 // pred_check_branch
      %28 = sbr.rel (0) target = $region29
    $region28: #{tpu_custom_call.1} parent=1 // pred_region
      _
    $region29: #{tpu_custom_call.1} parent=1 // pred_fallthru
      _
    %v29 = vld [vmem:[%s2] sm:$0xff]
    %v30 = vld [vmem:[%s2 + $0x8] sm:$0xff]
    %v31 = vld [vmem:[%s2 + $0x10] sm:$0xff]
    %v32 = vld [vmem:[%s2 + $0x18] sm:$0x3f]
    %v33 = vld [vmem:[%s0] sm:$0xff]
    %v34 = vld [vmem:[%s3] sm:$0xff]
    %v35 = vld [vmem:[%s3 + $0x8] sm:$0xff]
    %v36 = vld [vmem:[%s3 + $0x10] sm:$0xff]
    %v37 = vld [vmem:[%s3 + $0x18] sm:$0x3f]
    %v38 = vld [vmem:[%s1] sm:$0xff]
    %vm39 = vcmask 31744
    %v41 = vsel %vm39, %v34, 0
    %v44 = vsel %vm39, %v35, 0
    %v47 = vsel %vm39, %v36, 0
    %v50 = vsel %vm39, %v37, 0
    %v53 = vsel %vm39, %v38, 0
    %55 = vmatprep.subr.mxu0 0.0
    %56 = vmatpush1.xpose.msra.mxu0 0.0
    %57 = vmatprep.subr.mxu0 0.0
    %58 = vmatpush1.xpose.msra.mxu0 0.0
    %59 = vmatprep.subr.mxu0 0.0
    %60 = vmatpush1.xpose.msra.mxu0 0.0
    %61 = vmatprep.subr.mxu0 0.0
    %62 = vmatpush1.xpose.msra.mxu0 0.0
    %63 = vmatprep.subr.mxu0 0.0
    %64 = vmatpush1.xpose.msra.mxu0 0.0
    %65 = vmatprep.subr.mxu0 0.0
    %66 = vmatpush1.xpose.msra.mxu0 0.0
    %67 = vmatprep.subr.mxu0 0.0
    %68 = vmatpush1.xpose.msra.mxu0 0.0
    %69 = vmatprep.subr.mxu0 0.0
    %70 = vmatpush1.xpose.msra.mxu0 0.0
    %71 = vmatprep.subr.mxu0 0.0
    %72 = vmatpush1.xpose.msra.mxu0 0.0
    %73 = vmatprep.subr.mxu0 0.0
    %74 = vmatpush1.xpose.msra.mxu0 0.0
    %75 = vmatprep.subr.mxu0 0.0
    %76 = vmatpush1.xpose.msra.mxu0 0.0
    %77 = vmatprep.subr.mxu0 0.0
    %78 = vmatpush1.xpose.msra.mxu0 0.0
    %79 = vmatprep.subr.mxu0 0.0
    %80 = vmatpush1.xpose.msra.mxu0 0.0
    %81 = vmatprep.subr.mxu0 0.0
    %82 = vmatpush1.xpose.msra.mxu0 0.0
    %83 = vmatprep.subr.mxu0 0.0
    %84 = vmatpush1.xpose.msra.mxu0 0.0
    %85 = vmatprep.subr.mxu0 0.0
    %86 = vmatpush1.xpose.msra.mxu0 %v53
    %87 = vmatprep.subr.mxu0 0.0
    %88 = vmatpush2.xpose.msra.mxu0 0.0
    %89 = vmatprep.subr.mxu0 0.0
    %90 = vmatpush2.xpose.msra.mxu0 0.0
    %91 = vmatprep.subr.mxu0 0.0
    %92 = vmatpush2.xpose.msra.mxu0 0.0
    %93 = vmatprep.subr.mxu0 0.0
    %94 = vmatpush2.xpose.msra.mxu0 0.0
    %95 = vmatprep.subr.mxu0 0.0
    %96 = vmatpush2.xpose.msra.mxu0 0.0
    %97 = vmatprep.subr.mxu0 0.0
    %98 = vmatpush2.xpose.msra.mxu0 0.0
    %99 = vmatprep.subr.mxu0 0.0
    %100 = vmatpush2.xpose.msra.mxu0 0.0
    %101 = vmatprep.subr.mxu0 0.0
    %102 = vmatpush2.xpose.msra.mxu0 0.0
    %103 = vmatprep.subr.mxu0 0.0
    %104 = vmatpush2.xpose.msra.mxu0 0.0
    %105 = vmatprep.subr.mxu0 0.0
    %106 = vmatpush2.xpose.msra.mxu0 0.0
    %107 = vmatprep.subr.mxu0 0.0
    %108 = vmatpush2.xpose.msra.mxu0 0.0
    %109 = vmatprep.subr.mxu0 0.0
    %110 = vmatpush2.xpose.msra.mxu0 0.0
    %111 = vmatprep.subr.mxu0 0.0
    %112 = vmatpush2.xpose.msra.mxu0 0.0
    %113 = vmatprep.subr.mxu0 0.0
    %114 = vmatpush2.xpose.msra.mxu0 0.0
    %115 = vmatprep.subr.mxu0 0.0
    %116 = vmatpush2.xpose.msra.mxu0 0.0
    %117 = vmatprep.subr.mxu0 0.0
    %118 = vmatpush2.xpose.msra.mxu0 0.0
    %119 = vmatprep.mubr.f32.mxu0 0.0
    %120 = vmatmul.mubr.f32.gmra.mxu0 %v41
    %v121 = vpop.f32.mrf.mxu0
    %v122 = vadd.f32 0.0, %v121
    %v123 = vpop.f32.mrf.mxu0
    %124 = vmatprep.mubr.f32.mxu0 0.0
    %125 = vmatmul.mubr.f32.gmra.mxu0 %v44
    %v126 = vpop.f32.mrf.mxu0
    %v127 = vadd.f32 0.0, %v126
    %v128 = vpop.f32.mrf.mxu0
    %129 = vmatprep.mubr.f32.mxu0 0.0
    %130 = vmatmul.mubr.f32.gmra.mxu0 %v47
    %v131 = vpop.f32.mrf.mxu0
    %v132 = vadd.f32 0.0, %v131
    %v133 = vpop.f32.mrf.mxu0
    %134 = vmatprep.mubr.f32.mxu0 0.0
    %135 = vmatmul.mubr.f32.gmra.mxu0 %v50
    %v136 = vpop.f32.mrf.mxu0
    %v137 = vadd.f32 0.0, %v136
    %v138 = vpop.f32.mrf.mxu0
    %139 = vdwg.mxu0
    %vm140 = vcmask 130048
    %v142 = vsel %vm140, %v29, 0
    %v145 = vsel %vm140, %v30, 0
    %v148 = vsel %vm140, %v31, 0
    %v151 = vsel %vm140, %v32, 0
    %v154 = vsel %vm140, %v33, 0
    %156 = vmatprep.subr.mxu0 0.0
    %157 = vmatpush1.xpose.msra.mxu0 0.0
    %158 = vmatprep.subr.mxu0 0.0
    %159 = vmatpush1.xpose.msra.mxu0 0.0
    %160 = vmatprep.subr.mxu0 0.0
    %161 = vmatpush1.xpose.msra.mxu0 0.0
    %162 = vmatprep.subr.mxu0 0.0
    %163 = vmatpush1.xpose.msra.mxu0 0.0
    %164 = vmatprep.subr.mxu0 0.0
    %165 = vmatpush1.xpose.msra.mxu0 0.0
    %166 = vmatprep.subr.mxu0 0.0
    %167 = vmatpush1.xpose.msra.mxu0 0.0
    %168 = vmatprep.subr.mxu0 0.0
    %169 = vmatpush1.xpose.msra.mxu0 0.0
    %170 = vmatprep.subr.mxu0 0.0
    %171 = vmatpush1.xpose.msra.mxu0 0.0
    %172 = vmatprep.subr.mxu0 0.0
    %173 = vmatpush1.xpose.msra.mxu0 0.0
    %174 = vmatprep.subr.mxu0 0.0
    %175 = vmatpush1.xpose.msra.mxu0 0.0
    %176 = vmatprep.subr.mxu0 0.0
    %177 = vmatpush1.xpose.msra.mxu0 0.0
    %178 = vmatprep.subr.mxu0 0.0
    %179 = vmatpush1.xpose.msra.mxu0 0.0
    %180 = vmatprep.subr.mxu0 0.0
    %181 = vmatpush1.xpose.msra.mxu0 0.0
    %182 = vmatprep.subr.mxu0 0.0
    %183 = vmatpush1.xpose.msra.mxu0 0.0
    %184 = vmatprep.subr.mxu0 0.0
    %185 = vmatpush1.xpose.msra.mxu0 0.0
    %186 = vmatprep.subr.mxu0 0.0
    %187 = vmatpush1.xpose.msra.mxu0 %v154
    %188 = vmatprep.subr.mxu0 0.0
    %189 = vmatpush2.xpose.msra.mxu0 0.0
    %190 = vmatprep.subr.mxu0 0.0
    %191 = vmatpush2.xpose.msra.mxu0 0.0
    %192 = vmatprep.subr.mxu0 0.0
    %193 = vmatpush2.xpose.msra.mxu0 0.0
    %194 = vmatprep.subr.mxu0 0.0
    %195 = vmatpush2.xpose.msra.mxu0 0.0
    %196 = vmatprep.subr.mxu0 0.0
    %197 = vmatpush2.xpose.msra.mxu0 0.0
    %198 = vmatprep.subr.mxu0 0.0
    %199 = vmatpush2.xpose.msra.mxu0 0.0
    %200 = vmatprep.subr.mxu0 0.0
    %201 = vmatpush2.xpose.msra.mxu0 0.0
    %202 = vmatprep.subr.mxu0 0.0
    %203 = vmatpush2.xpose.msra.mxu0 0.0
    %204 = vmatprep.subr.mxu0 0.0
    %205 = vmatpush2.xpose.msra.mxu0 0.0
    %206 = vmatprep.subr.mxu0 0.0
    %207 = vmatpush2.xpose.msra.mxu0 0.0
    %208 = vmatprep.subr.mxu0 0.0
    %209 = vmatpush2.xpose.msra.mxu0 0.0
    %210 = vmatprep.subr.mxu0 0.0
    %211 = vmatpush2.xpose.msra.mxu0 0.0
    %212 = vmatprep.subr.mxu0 0.0
    %213 = vmatpush2.xpose.msra.mxu0 0.0
    %214 = vmatprep.subr.mxu0 0.0
    %215 = vmatpush2.xpose.msra.mxu0 0.0
    %216 = vmatprep.subr.mxu0 0.0
    %217 = vmatpush2.xpose.msra.mxu0 0.0
    %218 = vmatprep.subr.mxu0 0.0
    %219 = vmatpush2.xpose.msra.mxu0 0.0
    %220 = vmatprep.mubr.f32.mxu0 0.0
    %221 = vmatmul.mubr.f32.gmra.mxu0 %v142
    %v222 = vpop.f32.mrf.mxu0
    %v223 = vadd.f32 %v122, %v222
    %v224 = vpop.f32.mrf.mxu0
    %225 = vmatprep.mubr.f32.mxu0 0.0
    %226 = vmatmul.mubr.f32.gmra.mxu0 %v145
    %v227 = vpop.f32.mrf.mxu0
    %v228 = vadd.f32 %v127, %v227
    %v229 = vpop.f32.mrf.mxu0
    %230 = vmatprep.mubr.f32.mxu0 0.0
    %231 = vmatmul.mubr.f32.gmra.mxu0 %v148
    %v232 = vpop.f32.mrf.mxu0
    %v233 = vadd.f32 %v132, %v232
    %v234 = vpop.f32.mrf.mxu0
    %235 = vmatprep.mubr.f32.mxu0 0.0
    %236 = vmatmul.mubr.f32.gmra.mxu0 %v151
    %v237 = vpop.f32.mrf.mxu0
    %v238 = vadd.f32 %v137, %v237
    %v239 = vpop.f32.mrf.mxu0
    %240 = vdwg.mxu0
    %v241 = vld [vmem:[%s4] sm:$0xff]
    %v242 = vld [vmem:[%s4 + $0x8] sm:$0xff]
    %v243 = vld [vmem:[%s4 + $0x10] sm:$0xff]
    %v244 = vld [vmem:[%s4 + $0x18] sm:$0x3f]
    %246 = vset.pattern.permute.xlu0 0
    %247 = vperm.xlu0 %246, %v241
    %v248 = vpop.permute.xlu0 %247
    %251 = vset.pattern.permute.xlu0 0
    %252 = vperm.xlu0 %251, %v242
    %v253 = vpop.permute.xlu0 %252
    %256 = vset.pattern.permute.xlu0 0
    %257 = vperm.xlu0 %256, %v243
    %v258 = vpop.permute.xlu0 %257
    %261 = vset.pattern.permute.xlu0 0
    %262 = vperm.xlu0 %261, %v244
    %v263 = vpop.permute.xlu0 %262
    %v265 = vadd.f32 %v223, %v248
    %v266 = vadd.f32 %v228, %v253
    %v267 = vadd.f32 %v233, %v258
    %v268 = vadd.f32 %v238, %v263
    %v269 = vmax.f32 %v265, 0.0
    %v270 = vmax.f32 %v266, 0.0
    %v271 = vmax.f32 %v267, 0.0
    %v272 = vmax.f32 %v268, 0.0
    %v273 = vld [vmem:[%s5] sm:$0xff]
    %v274 = vld [vmem:[%s5 + $0x8] sm:$0xff]
    %v275 = vld [vmem:[%s5 + $0x10] sm:$0xff]
    %v276 = vld [vmem:[%s5 + $0x18] sm:$0x3f]
    %278 = vset.pattern.permute.xlu0 0
    %279 = vperm.xlu0 %278, %v273
    %v280 = vpop.permute.xlu0 %279
    %283 = vset.pattern.permute.xlu0 0
    %284 = vperm.xlu0 %283, %v274
    %v285 = vpop.permute.xlu0 %284
    %288 = vset.pattern.permute.xlu0 0
    %289 = vperm.xlu0 %288, %v275
    %v290 = vpop.permute.xlu0 %289
    %293 = vset.pattern.permute.xlu0 0
    %294 = vperm.xlu0 %293, %v276
    %v295 = vpop.permute.xlu0 %294
    %v297 = vmul.f32 %v269, %v280
    %v298 = vmul.f32 %v270, %v285
    %v299 = vmul.f32 %v271, %v290
    %v300 = vmul.f32 %v272, %v295
    %vm301 = vcmask 64512
    %v302 = vsel %vm301, %v297, 0.0
    %v303 = vsel %vm301, %v298, 0.0
    %v304 = vadd.f32 %v302, %v303
    %v305 = vsel %vm301, %v299, 0.0
    %v306 = vadd.f32 %v304, %v305
    %vm307 = vcmask 62464
    %v308 = vsel %vm307, %v300, 0.0
    %v309 = vadd.f32 %v306, %v308
    %v310 = vrot.slane %v309, 4
    %v311 = vadd.f32 %v309, %v310
    %v312 = vrot.slane %v311, 2
    %v313 = vadd.f32 %v311, %v312
    %v314 = vrot.slane %v313, 1
    %v315 = vadd.f32 %v313, %v314
    %v316 = vld [vmem:[#allocation2] sm:$0x1]
    %318 = vset.pattern.permute.xlu0 0
    %319 = vperm.xlu0 %318, %v316
    %v320 = vpop.permute.xlu0 %319
    %v322 = vlaneseq
    %v323 = vshrl.u32 %v322, 7
    %v324 = vsub.s32 0, %v323
    %v325 = vrot.slane %v320, %v324
    %v326 = vadd.f32 %v315, %v325
    %vm327 = vcmask 57344
    %328 = vst.msk [vmem:[#allocation3] sm:$0x1] %vm327, %v326
    // Predicated region
    $region30: #{tpu_custom_call.1} parent=1 // pred_check
      _
    $region31: #{tpu_custom_call.1} parent=1 // pred_check_branch
      %330 = sbr.rel (0) target = $region33
    $region32: #{tpu_custom_call.1} parent=1 // pred_region
      %s332 = ssub.s32 16, 16
      %333 = vsyncadd [#allocation4], %s332
      %s335 = sshll.u32 [#allocation3], 4
      %s336 = int_to_ptr.vmem [resolvable:$true] %s335
      %338 = dma.vmem_to_hbm [thread:$0]  %s336, 16, %s7, [#allocation4]
    $region33: #{tpu_custom_call.1} parent=1 // pred_fallthru
      _
    // Predicated region
    $region34: #{tpu_custom_call.1} parent=1 // pred_check
      _
    $region35: #{tpu_custom_call.1} parent=1 // pred_check_branch
      %340 = sbr.rel (0) target = $region37
    $region36: #{tpu_custom_call.1} parent=1 // pred_region
      %341 = dma.done [#allocation4], 16
    $region37: #{tpu_custom_call.1} parent=1 // pred_fallthru
      _
    %342 = vsyncpa [#allocation4], 1

</llo_original>
